<compile_context>
chip_gen: v6e
topology: v6e:2x2x1
jax: 0.10.0
libtpu: 0.0.40
codegen_flags: <defaults>
</compile_context>

<pallas_src>
import functools

import jax
import jax.numpy as jnp
from jax.experimental import pallas as pl
from jax.experimental.pallas import tpu as pltpu


def _reliability_corr_kernel(gt_ref, rel_ref, out_ref, *, ns):
    """gt_ref: (TB, NS); rel_ref: (TB, 2*NS); out_ref: (TB, 2)."""
    gt = gt_ref[...]                                   # (TB, NS)
    rel = rel_ref[...]                                 # (TB, 2*NS)
    # Static lane slices inside VMEM (cheap XLU work) instead of separate
    # strided HBM inputs.
    rgb_dist = jnp.abs(gt - rel[:, :ns])               # (TB, NS)
    dep_dist = jnp.abs(gt - rel[:, ns:])                # (TB, NS)
    rgb_mean = jnp.mean(rgb_dist, axis=-1, keepdims=True)   # (TB, 1)
    dep_mean = jnp.mean(dep_dist, axis=-1, keepdims=True)   # (TB, 1)
    # One store for the whole (TB, 2) block.
    # On a ragged final batch block the padded rows read unspecified input;
    # this is safe because there is no cross-row coupling and those rows are
    # masked on writeback.  (Do NOT add batch-axis reductions here.)
    out_ref[...] = jnp.concatenate([rgb_mean, dep_mean], axis=-1)


def _vmem_limit_and_budget():
    """Explicit scoped-VMEM limit + tile budget, valid on v5e/v6e/v7x."""
    try:
        phys = pltpu.get_tpu_info().vmem_capacity_bytes
    except Exception:  # be robust if the query is unavailable
        phys = 64 * 1024 * 1024            # v7x per-TensorCore floor
    limit = min(phys // 2, 48 * 1024 * 1024)
    budget = limit - 2 * 1024 * 1024       # headroom for Mosaic scratch
    return limit, budget


def _pick_batch_tile(b: int, ns: int, budget: int) -> int:
    """Largest batch tile (multiple of 8) whose blocks fit the VMEM budget."""
    padded_ns = ((ns + 127) // 128) * 128           # gt block lane padding
    padded_2ns = ((2 * ns + 127) // 128) * 128      # reliance block
    # double-buffered by the pipeliner; + tiny (TB, 2)->(TB, 128) out block
    row_bytes = 2 * (padded_ns + padded_2ns + 128) * 4
    cap = (budget // row_bytes) // 8 * 8
    cap = max(8, cap)
    return b if b <= cap else cap


def reliability_correlation_gt(gt_guide, reliance_input, *, tb=None):
    """Pallas implementation of ReliabilityCorrelationGT.forward.

    gt_guide:        (B, 1, NS) float32
    reliance_input:  (B, 2*NS)  float32
    returns:         (B, 2)     float32
    """
    gt3 = jnp.asarray(gt_guide, jnp.float32)
    rel = jnp.asarray(reliance_input, jnp.float32)
    b, one, ns = gt3.shape
    assert one == 1 and rel.shape == (b, 2 * ns), (gt3.shape, rel.shape)

    # Free metadata reshape; avoids a squeezed-dim 3-D BlockSpec.
    gt = gt3.reshape(b, ns)

    vmem_limit, budget = _vmem_limit_and_budget()
    if tb is None:
        tb = _pick_batch_tile(b, ns, budget)
    if tb >= b:
        tb = b                              # single block covers the batch
    else:
        tb = max(8, (tb // 8) * 8)          # (8,128) rule on 2nd-to-last dim

    grid = (pl.cdiv(b, tb),)

    out = pl.pallas_call(
        functools.partial(_reliability_corr_kernel, ns=ns),
        out_shape=jax.ShapeDtypeStruct((b, 2), jnp.float32),
        grid=grid,
        in_specs=[
            pl.BlockSpec((tb, ns), lambda i: (i, 0)),        # gt (B, NS)
            pl.BlockSpec((tb, 2 * ns), lambda i: (i, 0)),    # reliance (B, 2*NS)
        ],
        out_specs=pl.BlockSpec((tb, 2), lambda i: (i, 0)),
        compiler_params=pltpu.CompilerParams(
            dimension_semantics=("parallel",),
            vmem_limit_bytes=vmem_limit,
        ),
    )(gt, rel)
    return out


def _reference(gt_guide, reliance_input, ns):
    gt = jnp.asarray(gt_guide, jnp.float32)[:, 0, :]
    rel = jnp.asarray(reliance_input, jnp.float32)
    rgb = jnp.mean(jnp.abs(gt - rel[:, :ns]), axis=-1)
    dep = jnp.mean(jnp.abs(gt - rel[:, ns:2 * ns]), axis=-1)
    return jnp.stack([rgb, dep], axis=-1)


if __name__ == "__main__":
    key = jax.random.PRNGKey(0)
    k1, k2, k3, k4 = jax.random.split(key, 4)

    # Case 1: module-like small shapes (B=2, NS=32), single grid step.
    NS, B = 32, 2
    gt_guide = jax.random.uniform(k1, (B, 1, NS), dtype=jnp.float32)
    reliance = jax.random.uniform(k2, (B, 2 * NS), dtype=jnp.float32)
    out = jax.block_until_ready(reliability_correlation_gt(gt_guide, reliance))
    ref = _reference(gt_guide, reliance, NS)
    assert out.shape == (B, 2), out.shape
    assert jnp.allclose(out, ref, atol=1e-5, rtol=1e-5), (out, ref)

    # Case 2: exercises the batch-tiled path, including a ragged final block
    # (B=10 with a forced tile of 8 -> grid of 2, last block half-padded).
    NS2, B2 = 48, 10
    gt2 = jax.random.uniform(k3, (B2, 1, NS2), dtype=jnp.float32)
    rel2 = jax.random.uniform(k4, (B2, 2 * NS2), dtype=jnp.float32)
    out2 = jax.block_until_ready(
        reliability_correlation_gt(gt2, rel2, tb=8))
    ref2 = _reference(gt2, rel2, NS2)
    assert out2.shape == (B2, 2), out2.shape
    assert jnp.allclose(out2, ref2, atol=1e-5, rtol=1e-5), (out2, ref2)

    print("KERNEL_OK")
</pallas_src>

<mosaic_0001>
module attributes {stable_mosaic.version = 11 : i64} {
  func.func @_reliability_corr_kernel(%arg0: i32, %arg1: memref<2x32xf32, #tpu.memory_space<vmem>>, %arg2: memref<2x64xf32, #tpu.memory_space<vmem>>, %arg3: memref<2x2xf32, #tpu.memory_space<vmem>>) attributes {dimension_semantics = [#tpu.dimension_semantics<parallel>], iteration_bounds = array<i64: 1>, scalar_prefetch = 0 : i64, scratch_operands = 0 : i64, tpu.core_type = #tpu.core_type<tc>, window_params = [{transform_indices = @transform_0, window_bounds = array<i64: 2, 32>}, {transform_indices = @transform_1, window_bounds = array<i64: 2, 64>}, {transform_indices = @transform_2, window_bounds = array<i64: 2, 2>}]} {
    %c0 = arith.constant 0 : index
    %c0_0 = arith.constant 0 : index
    %0 = vector.load %arg1[%c0, %c0_0] : memref<2x32xf32, #tpu.memory_space<vmem>>, vector<2x32xf32>
    %c0_1 = arith.constant 0 : index
    %c0_2 = arith.constant 0 : index
    %1 = vector.load %arg2[%c0_1, %c0_2] : memref<2x64xf32, #tpu.memory_space<vmem>>, vector<2x64xf32>
    %2 = vector.extract_strided_slice %1 {offsets = [0, 0], sizes = [2, 32], strides = [1, 1]} : vector<2x64xf32> to vector<2x32xf32>
    %3 = arith.subf %0, %2 : vector<2x32xf32>
    %4 = math.absf %3 : vector<2x32xf32>
    %5 = vector.extract_strided_slice %1 {offsets = [0, 32], sizes = [2, 32], strides = [1, 1]} : vector<2x64xf32> to vector<2x32xf32>
    %6 = arith.subf %0, %5 : vector<2x32xf32>
    %7 = math.absf %6 : vector<2x32xf32>
    %cst = arith.constant dense<0.000000e+00> : vector<2xf32>
    %8 = vector.multi_reduction <add>, %4, %cst [1] : vector<2x32xf32> to vector<2xf32>
    %9 = vector.shape_cast %8 : vector<2xf32> to vector<2x1xf32>
    %cst_3 = arith.constant 3.200000e+01 : f32
    %10 = vector.broadcast %cst_3 : f32 to vector<2x1xf32>
    %11 = arith.divf %9, %10 : vector<2x1xf32>
    %cst_4 = arith.constant dense<0.000000e+00> : vector<2xf32>
    %12 = vector.multi_reduction <add>, %7, %cst_4 [1] : vector<2x32xf32> to vector<2xf32>
    %13 = vector.shape_cast %12 : vector<2xf32> to vector<2x1xf32>
    %cst_5 = arith.constant 3.200000e+01 : f32
    %14 = vector.broadcast %cst_5 : f32 to vector<2x1xf32>
    %15 = arith.divf %13, %14 : vector<2x1xf32>
    %16 = tpu.concatenate %11, %15 in 1 : vector<2x1xf32>, vector<2x1xf32> -> vector<2x2xf32>
    %c0_6 = arith.constant 0 : index
    %c0_7 = arith.constant 0 : index
    %17 = vector.load %arg3[%c0_6, %c0_7] : memref<2x2xf32, #tpu.memory_space<vmem>>, vector<2x2xf32>
    tpu.vector_store %arg3[%c0_6, %c0_7], %16 {strides = array<i32>} : memref<2x2xf32, #tpu.memory_space<vmem>>, vector<2x2xf32>,
    return
  }
  func.func @transform_0(%arg0: i32) -> (i32, i32) {
    %c0_i32 = arith.constant 0 : i32
    %c0_i32_0 = arith.constant 0 : i32
    return %arg0, %c0_i32 : i32, i32
  }
  func.func @transform_1(%arg0: i32) -> (i32, i32) {
    %c0_i32 = arith.constant 0 : i32
    %c0_i32_0 = arith.constant 0 : i32
    return %arg0, %c0_i32 : i32, i32
  }
  func.func @transform_2(%arg0: i32) -> (i32, i32) {
    %c0_i32 = arith.constant 0 : i32
    %c0_i32_0 = arith.constant 0 : i32
    return %arg0, %c0_i32 : i32, i32
  }
}

</mosaic_0001>

<llo_original>
// kernel: tpu_custom_call.1
$region0: #{tpu_custom_call.1}
  #allocation0 [shape = 'u32[]', space=smem, size = 0x4, offset = 0x4, fixed_abs, tag = 'smem constant byte address 0x4 - core index']
  #allocation1 [shape = 'u32[144,128]{1,0:T(1,128)}', space=vmem, size = 0x12000, scoped, tag = 'internal scratch']
  %s0 = inlined_call_operand.hbm [shape: f32[2,32], index: 0, kind: input, shape index: {}]
  %s1 = inlined_call_operand.hbm [shape: f32[2,64], index: 1, kind: input, shape index: {}]
  %s2 = inlined_call_operand.hbm [shape: f32[2,2], index: 2, kind: output, shape index: {}]
  %s3 = sld [smem:[#allocation0]]
  $region26: #{tpu_custom_call.1} parent=0
    _
  %s5 = ssub.s32 1, %s3
  %s6 = scalar_select 0, %s5, %s3
  $region1: #{tpu_custom_call.1} parent=0
    #allocation2 [shape = 'u8[1024]{0}', space=vmem, size = 0x400, scoped, tag = 'input window, operand 0, single buffered']
    #allocation3 [shape = 's32[1]{0}', space=sflag, size = 0x4, scoped, tag = 'scoped memory for tpu_custom_call.1']
    #allocation4 [shape = 's32[1]{0}', space=sflag, size = 0x4, scoped, tag = 'scoped memory for tpu_custom_call.1']
    #allocation5 [shape = 'u8[1024]{0}', space=vmem, size = 0x400, scoped, tag = 'input window, operand 1, single buffered']
    #allocation6 [shape = 's32[1]{0}', space=sflag, size = 0x4, scoped, tag = 'scoped memory for tpu_custom_call.1']
    #allocation7 [shape = 'u8[1024]{0}', space=vmem, size = 0x400, scoped, tag = 'output window, operand 0, single buffered']
    %7 = vsyncpa [#allocation3], 0
    %8 = vsyncpa [#allocation6], 0
    %9 = vsyncpa [#allocation4], 0
    // Predicated region
    $region2: #{tpu_custom_call.1} parent=1 // pred_check
      _
    $region3: #{tpu_custom_call.1} parent=1 // pred_check_branch
      %11 = sbr.rel (0) target = $region5
    $region4: #{tpu_custom_call.1} parent=1 // pred_region
      %s13 = ssub.s32 32, 32
      %14 = vsyncadd [#allocation3], %s13
      %s16 = sshll.u32 [#allocation2], 4
      %s17 = int_to_ptr.vmem [resolvable:$true] %s16
      %19 = dma.hbm_to_vmem [thread:$0]  %s0, 32, %s17, [#allocation3]
    $region5: #{tpu_custom_call.1} parent=1 // pred_fallthru
      _
    // Predicated region
    $region6: #{tpu_custom_call.1} parent=1 // pred_check
      _
    $region7: #{tpu_custom_call.1} parent=1 // pred_check_branch
      %21 = sbr.rel (0) target = $region9
    $region8: #{tpu_custom_call.1} parent=1 // pred_region
      %s23 = ssub.s32 32, 32
      %24 = vsyncadd [#allocation6], %s23
      %s26 = sshll.u32 [#allocation5], 4
      %s27 = int_to_ptr.vmem [resolvable:$true] %s26
      %29 = dma.hbm_to_vmem [thread:$0]  %s1, 32, %s27, [#allocation6]
    $region9: #{tpu_custom_call.1} parent=1 // pred_fallthru
      _
    // Predicated region
    $region10: #{tpu_custom_call.1} parent=1 // pred_check
      _
    $region11: #{tpu_custom_call.1} parent=1 // pred_check_branch
      %31 = sbr.rel (0) target = $region13
    $region12: #{tpu_custom_call.1} parent=1 // pred_region
      %32 = dma.done [#allocation3], 32
    $region13: #{tpu_custom_call.1} parent=1 // pred_fallthru
      _
    // Predicated region
    $region14: #{tpu_custom_call.1} parent=1 // pred_check
      _
    $region15: #{tpu_custom_call.1} parent=1 // pred_check_branch
      %34 = sbr.rel (0) target = $region17
    $region16: #{tpu_custom_call.1} parent=1 // pred_region
      %35 = dma.done [#allocation6], 32
    $region17: #{tpu_custom_call.1} parent=1 // pred_fallthru
      _
    %v36 = vld [vmem:[#allocation2] sm:$0x3]
    %v37 = vld [vmem:[#allocation5] sm:$0x3]
    %v38 = vsub.f32 %v36, %v37
    %v39 = vand.u32 2147483647, %v38
    %41 = vrot.lane.b32.xlu0 %v37, 96
    %v42 = vpop.permute.xlu0 %41
    %v44 = vsub.f32 %v36, %v42
    %v45 = vand.u32 2147483647, %v44
    %vm46 = vcmask 254976
    %v47 = vsel %vm46, %v39, 0.0
    %48 = vadd.xlane.f32.xlu0 %v47
    %v49 = vpop.xlane.xlu0 %48
    %v50 = vrcp.pop 32.0
    %v51 = vmul.f32 %v49, %v50
    %v52 = vsel %vm46, %v45, 0.0
    %53 = vadd.xlane.f32.xlu0 %v52
    %v54 = vpop.xlane.xlu0 %53
    %v55 = vmul.f32 %v54, %v50
    %vm56 = vcmask 7168
    %v57 = vsel %vm56, %v51, %v55
    %vm58 = vcmask 9216
    %59 = vst.msk [vmem:[#allocation7] sm:$0x3] %vm58, %v57
    // Predicated region
    $region18: #{tpu_custom_call.1} parent=1 // pred_check
      _
    $region19: #{tpu_custom_call.1} parent=1 // pred_check_branch
      %61 = sbr.rel (0) target = $region21
    $region20: #{tpu_custom_call.1} parent=1 // pred_region
      %s63 = ssub.s32 32, 32
      %64 = vsyncadd [#allocation4], %s63
      %s66 = sshll.u32 [#allocation7], 4
      %s67 = int_to_ptr.vmem [resolvable:$true] %s66
      %69 = dma.vmem_to_hbm [thread:$0]  %s67, 32, %s2, [#allocation4]
    $region21: #{tpu_custom_call.1} parent=1 // pred_fallthru
      _
    // Predicated region
    $region22: #{tpu_custom_call.1} parent=1 // pred_check
      _
    $region23: #{tpu_custom_call.1} parent=1 // pred_check_branch
      %71 = sbr.rel (0) target = $region25
    $region24: #{tpu_custom_call.1} parent=1 // pred_region
      %72 = dma.done [#allocation4], 32
    $region25: #{tpu_custom_call.1} parent=1 // pred_fallthru
      _
    %73 = vsyncpa [#allocation3], 1
    %74 = vsyncpa [#allocation6], 1
    %75 = vsyncpa [#allocation4], 1

</llo_original>
